<compile_context>
chip_gen: v5e
topology: v5e:2x2
jax: 0.10.0
libtpu: 0.0.40
codegen_flags: <defaults>
</compile_context>

<pallas_src>
import jax
import jax.numpy as jnp
from jax.experimental import pallas as pl
from jax.experimental.pallas import tpu as pltpu

_MIB = 1024 * 1024


def _amw_kernel(vf_ref, tf_ref,
                w1v_ref, b1v_ref, w2v_ref, b2v_ref,
                w1t_ref, b1t_ref, w2t_ref, b2t_ref,
                out_ref):
    """One batch tile: both uncertainty heads + inverse-uncertainty weights.

    Every intermediate keeps the batch tile on the LANE axis, so the final
    store is a full-lane (unmasked) write of a (2, tb) block.
    """
    # Contract the H axis of both operands: (half, H) x (tb, H) -> (half, tb).
    dimnums = (((1,), (1,)), ((), ()))

    def uncertainty(x_ref, w1_ref, b1_ref, w2_ref, b2_ref):
        # Layer 1 on the MXU, f32 accumulation, batch stays on lanes.
        h = jax.lax.dot_general(w1_ref[...], x_ref[...], dimnums,
                                preferred_element_type=jnp.float32)
        h = jnp.maximum(h + b1_ref[...], 0.0)            # (half, tb)
        # Layer 2 has output width 1: keep it off the MXU.
        # VPU multiply + XLU sublane reduction -> (1, tb) row.
        logit = jnp.sum(h * w2_ref[...], axis=0, keepdims=True) + b2_ref[...]
        return jax.nn.sigmoid(logit)                     # (1, tb)

    u_v = uncertainty(vf_ref, w1v_ref, b1v_ref, w2v_ref, b2v_ref)
    u_t = uncertainty(tf_ref, w1t_ref, b1t_ref, w2t_ref, b2t_ref)

    # vision_weight = (1/(1+u_v)) / (1/(1+u_v) + 1/(1+u_t)) = (1+u_t)/(2+u_v+u_t)
    # Exact divide: the kernel is HBM-bound, so the extra precision is free.
    inv_den = 1.0 / (2.0 + u_v + u_t)
    out_ref[0:1, :] = ((1.0 + u_t) * inv_den).astype(out_ref.dtype)  # vision
    out_ref[1:2, :] = ((1.0 + u_v) * inv_den).astype(out_ref.dtype)  # text


def _vmem_capacity_bytes():
    """Physical VMEM of this generation; conservative (v7x) fallback."""
    try:
        return int(pltpu.get_tpu_info().vmem_capacity_bytes)
    except Exception:
        return 64 * _MIB


def _choose_batch_tile(B, H, half, feat_itemsize, vmem_cap):
    """Largest batch tile whose padded VMEM footprint fits the budget.

    Accounts for (8,128)-style lane/sublane padding, the resident parameter
    blocks (counted double-buffered in case single buffering is rejected),
    the hidden activations and the lane-dense output block.
    """
    LANE = 128
    sublane = max(8, 32 // feat_itemsize)   # f32:8, bf16:16, int8:32

    def pad(n, m):
        return -(-n // m) * m

    # Total-footprint budget: <=48 MiB and <=3/4 of this chip's VMEM
    # (keeps v7x's 64 MiB happy while using v5e/v6e's 128 MiB well).
    budget = min(48 * _MIB, (3 * vmem_cap) // 4)

    # Resident f32 parameter blocks, per head (w1, b1, w2, b2), x2 heads,
    # x2 buffers (worst case if single-buffering falls back to default).
    per_head_params = (pad(half, 8) * pad(H, LANE)    # w1
                       + pad(half, 8) * LANE          # b1
                       + pad(half, 8) * LANE          # w2
                       + 8 * LANE) * 4                # b2
    fixed = 2 * 2 * per_head_params

    # Bytes that scale with one batch row of the tile:
    #   features : 2 modalities x 2 pipeline buffers, lane-padded
    #   hidden hT: (half, tb) f32 per head -> per-lane-column cost
    #   output   : (2, tb) f32 x 2 buffers, sublane-padded to 8 rows
    #   + slack for small elementwise temporaries
    per_row = (2 * 2 * pad(H, LANE) * feat_itemsize
               + 2 * pad(half, 8) * 4
               + 2 * 8 * 4
               + 512)

    avail = max(budget - fixed, per_row * sublane)
    tb = max(int(avail // per_row), 1)

    if tb >= B:
        return B
    # Multi-tile case: the last dim of the (2, tb) output block must be a
    # multiple of 128 (this also satisfies the feature block's sublane
    # alignment for any dtype).
    tb = max(LANE, (tb // LANE) * LANE)
    return min(tb, B)


def _make_call(B, H, half, tb, feat_dtype, single_buffer_params, vmem_limit):
    grid = (pl.cdiv(B, tb),)
    feat_itemsize = jnp.dtype(feat_dtype).itemsize

    feat_spec = pl.BlockSpec((tb, H), lambda i: (i, 0))

    if single_buffer_params:
        def resident(shape):
            # Constant index_map -> fetched once; single buffer saves VMEM.
            return pl.BlockSpec(shape, lambda i: (0, 0),
                                pipeline_mode=pl.Buffered(1))
    else:
        def resident(shape):
            return pl.BlockSpec(shape, lambda i: (0, 0))

    cost = pl.CostEstimate(
        flops=4 * B * H * half + 8 * B * half + 16 * B,
        transcendentals=2 * B,
        bytes_accessed=(2 * B * H * feat_itemsize
                        + 2 * (half * H + 3 * half + 1) * 4
                        + 2 * B * 4),
    )

    return pl.pallas_call(
        _amw_kernel,
        out_shape=jax.ShapeDtypeStruct((2, B), jnp.float32),
        grid=grid,
        in_specs=[
            feat_spec, feat_spec,
            resident((half, H)), resident((half, 1)),
            resident((half, 1)), resident((1, 1)),
            resident((half, H)), resident((half, 1)),
            resident((half, 1)), resident((1, 1)),
        ],
        out_specs=pl.BlockSpec((2, tb), lambda i: (0, i)),
        compiler_params=pltpu.CompilerParams(
            # Batch axis is embarrassingly parallel -> megacore sharding on
            # multi-TensorCore parts; near-no-op on single-TC chips.
            dimension_semantics=("parallel",),
            vmem_limit_bytes=vmem_limit,
        ),
        cost_estimate=cost,
    )


def adaptive_modality_weighting(vision_feat, text_feat, params, *,
                                batch_tile=None):
    """params: dict with w1v [half,H], b1v [half,1], w2v [half,1], b2v [1,1]
    and the same for the text head (w1t, b1t, w2t, b2t)."""
    B, H = vision_feat.shape
    half = params["w1v"].shape[0]
    itemsize = jnp.dtype(vision_feat.dtype).itemsize

    vmem_cap = _vmem_capacity_bytes()
    if batch_tile is not None:
        tb = min(int(batch_tile), B)
        if tb < B:
            tb = max(128, (tb // 128) * 128)
    else:
        tb = _choose_batch_tile(B, H, half, itemsize, vmem_cap)
    vmem_limit = max(min(int(vmem_cap * 0.9), 96 * _MIB), 32 * _MIB)

    args = (vision_feat, text_feat,
            params["w1v"], params["b1v"], params["w2v"], params["b2v"],
            params["w1t"], params["b1t"], params["w2t"], params["b2t"])

    try:
        out = _make_call(B, H, half, tb, vision_feat.dtype, True, vmem_limit)(*args)
    except Exception:
        # pipeline_mode=pl.Buffered(1) not accepted on this JAX build:
        # fall back to default double-buffered parameter blocks.
        out = _make_call(B, H, half, tb, vision_feat.dtype, False, vmem_limit)(*args)

    vision_weight = out[0:1, :].T   # (B, 1)
    text_weight = out[1:2, :].T     # (B, 1)
    return vision_weight, text_weight


def init_params(key, hidden_dim):
    """Deterministic init (PyTorch nn.Linear-like uniform ranges)."""
    half = hidden_dim // 2
    ks = jax.random.split(key, 8)

    def uni(k, fan_in, shape):
        bound = 1.0 / (fan_in ** 0.5)
        return jax.random.uniform(k, shape, jnp.float32, -bound, bound)

    return dict(
        w1v=uni(ks[0], hidden_dim, (half, hidden_dim)),   # nn.Linear layout
        b1v=uni(ks[1], hidden_dim, (half, 1)),
        w2v=uni(ks[2], half, (half, 1)),                  # [1,half] weight^T
        b2v=uni(ks[3], half, (1, 1)),
        w1t=uni(ks[4], hidden_dim, (half, hidden_dim)),
        b1t=uni(ks[5], hidden_dim, (half, 1)),
        w2t=uni(ks[6], half, (half, 1)),
        b2t=uni(ks[7], half, (1, 1)),
    )


def reference(vision_feat, text_feat, p):
    """Pure-JAX reference matching the PyTorch forward."""
    def head(x, w1, b1, w2, b2):
        h = jnp.maximum(x @ w1.T + b1[:, 0], 0.0)
        return jax.nn.sigmoid(h @ w2 + b2)

    u_v = head(vision_feat, p["w1v"], p["b1v"], p["w2v"], p["b2v"])
    u_t = head(text_feat, p["w1t"], p["b1t"], p["w2t"], p["b2t"])
    w_v = 1.0 / (1.0 + u_v)
    w_t = 1.0 / (1.0 + u_t)
    tot = w_v + w_t
    return w_v / tot, w_t / tot


if __name__ == "__main__":
    key = jax.random.PRNGKey(0)

    # --- Small demo shapes: batch=8, hidden_dim=32 (single tile) ---
    B, H = 8, 32
    k_p, k_v, k_t, k2 = jax.random.split(key, 4)
    params = init_params(k_p, H)
    vision_feat = jax.random.normal(k_v, (B, H), jnp.float32)
    text_feat = jax.random.normal(k_t, (B, H), jnp.float32)

    vw, tw = adaptive_modality_weighting(vision_feat, text_feat, params)
    jax.block_until_ready((vw, tw))

    vw_ref, tw_ref = reference(vision_feat, text_feat, params)
    assert vw.shape == (B, 1) and tw.shape == (B, 1)
    assert jnp.allclose(vw, vw_ref, atol=1e-5), "vision_weight mismatch"
    assert jnp.allclose(tw, tw_ref, atol=1e-5), "text_weight mismatch"
    assert jnp.allclose(vw + tw, 1.0, atol=1e-6), "weights do not sum to 1"

    # --- Multi-tile path (2 grid steps), still small ---
    B2, H2 = 256, 128
    kp2, kv2, kt2 = jax.random.split(k2, 3)
    params2 = init_params(kp2, H2)
    vf2 = jax.random.normal(kv2, (B2, H2), jnp.float32)
    tf2 = jax.random.normal(kt2, (B2, H2), jnp.float32)
    vw2, tw2 = adaptive_modality_weighting(vf2, tf2, params2, batch_tile=128)
    jax.block_until_ready((vw2, tw2))
    vw2_ref, tw2_ref = reference(vf2, tf2, params2)
    assert jnp.allclose(vw2, vw2_ref, atol=1e-5), "tiled vision_weight mismatch"
    assert jnp.allclose(tw2, tw2_ref, atol=1e-5), "tiled text_weight mismatch"

    print("KERNEL_OK")
</pallas_src>

<mosaic_0001>
module attributes {stable_mosaic.version = 11 : i64} {
  func.func @_amw_kernel(%arg0: i32, %arg1: memref<8x32xf32, #tpu.memory_space<vmem>>, %arg2: memref<8x32xf32, #tpu.memory_space<vmem>>, %arg3: memref<16x32xf32, #tpu.memory_space<vmem>>, %arg4: memref<16x1xf32, #tpu.memory_space<vmem>>, %arg5: memref<16x1xf32, #tpu.memory_space<vmem>>, %arg6: memref<1x1xf32, #tpu.memory_space<vmem>>, %arg7: memref<16x32xf32, #tpu.memory_space<vmem>>, %arg8: memref<16x1xf32, #tpu.memory_space<vmem>>, %arg9: memref<16x1xf32, #tpu.memory_space<vmem>>, %arg10: memref<1x1xf32, #tpu.memory_space<vmem>>, %arg11: memref<2x8xf32, #tpu.memory_space<vmem>>) attributes {dimension_semantics = [#tpu.dimension_semantics<parallel>], iteration_bounds = array<i64: 1>, scalar_prefetch = 0 : i64, scratch_operands = 0 : i64, tpu.core_type = #tpu.core_type<tc>, window_params = [{transform_indices = @transform_0, window_bounds = array<i64: 8, 32>}, {transform_indices = @transform_1, window_bounds = array<i64: 8, 32>}, {pipeline_mode = #tpu.pipeline_mode<synchronous>, transform_indices = @transform_2, window_bounds = array<i64: 16, 32>}, {pipeline_mode = #tpu.pipeline_mode<synchronous>, transform_indices = @transform_3, window_bounds = array<i64: 16, 1>}, {pipeline_mode = #tpu.pipeline_mode<synchronous>, transform_indices = @transform_4, window_bounds = array<i64: 16, 1>}, {pipeline_mode = #tpu.pipeline_mode<synchronous>, transform_indices = @transform_5, window_bounds = array<i64: 1, 1>}, {pipeline_mode = #tpu.pipeline_mode<synchronous>, transform_indices = @transform_6, window_bounds = array<i64: 16, 32>}, {pipeline_mode = #tpu.pipeline_mode<synchronous>, transform_indices = @transform_7, window_bounds = array<i64: 16, 1>}, {pipeline_mode = #tpu.pipeline_mode<synchronous>, transform_indices = @transform_8, window_bounds = array<i64: 16, 1>}, {pipeline_mode = #tpu.pipeline_mode<synchronous>, transform_indices = @transform_9, window_bounds = array<i64: 1, 1>}, {transform_indices = @transform_10, window_bounds = array<i64: 2, 8>}]} {
    %c0 = arith.constant 0 : index
    %c0_0 = arith.constant 0 : index
    %0 = vector.load %arg3[%c0, %c0_0] : memref<16x32xf32, #tpu.memory_space<vmem>>, vector<16x32xf32>
    %c0_1 = arith.constant 0 : index
    %c0_2 = arith.constant 0 : index
    %1 = vector.load %arg1[%c0_1, %c0_2] : memref<8x32xf32, #tpu.memory_space<vmem>>, vector<8x32xf32>
    %cst = arith.constant dense<0.000000e+00> : vector<16x8xf32>
    %2 = tpu.matmul %0, %1, %cst {dimension_numbers = #tpu.dot_dimension_numbers<[1], [1], [0], [0], [0, 0, 1, 0], [], []>} : vector<16x32xf32>, vector<8x32xf32>, vector<16x8xf32> -> vector<16x8xf32>
    %c0_3 = arith.constant 0 : index
    %c0_4 = arith.constant 0 : index
    %3 = vector.load %arg4[%c0_3, %c0_4] : memref<16x1xf32, #tpu.memory_space<vmem>>, vector<16x1xf32>
    %4 = vector.broadcast %3 : vector<16x1xf32> to vector<16x8xf32>
    %5 = arith.addf %2, %4 : vector<16x8xf32>
    %cst_5 = arith.constant 0.000000e+00 : f32
    %6 = vector.broadcast %cst_5 : f32 to vector<16x8xf32>
    %7 = arith.maximumf %5, %6 : vector<16x8xf32>
    %c0_6 = arith.constant 0 : index
    %c0_7 = arith.constant 0 : index
    %8 = vector.load %arg5[%c0_6, %c0_7] : memref<16x1xf32, #tpu.memory_space<vmem>>, vector<16x1xf32>
    %9 = vector.broadcast %8 : vector<16x1xf32> to vector<16x8xf32>
    %10 = arith.mulf %7, %9 : vector<16x8xf32>
    %cst_8 = arith.constant dense<0.000000e+00> : vector<8xf32>
    %11 = vector.multi_reduction <add>, %10, %cst_8 [0] : vector<16x8xf32> to vector<8xf32>
    %12 = vector.shape_cast %11 : vector<8xf32> to vector<1x8xf32>
    %c0_9 = arith.constant 0 : index
    %c0_10 = arith.constant 0 : index
    %13 = vector.load %arg6[%c0_9, %c0_10] : memref<1x1xf32, #tpu.memory_space<vmem>>, vector<1x1xf32>
    %14 = vector.broadcast %13 : vector<1x1xf32> to vector<1x8xf32>
    %15 = arith.addf %12, %14 : vector<1x8xf32>
    %16 = arith.negf %15 : vector<1x8xf32>
    %17 = math.exp %16 : vector<1x8xf32>
    %cst_11 = arith.constant 1.000000e+00 : f32
    %18 = vector.broadcast %cst_11 : f32 to vector<1x8xf32>
    %19 = arith.addf %18, %17 : vector<1x8xf32>
    %20 = arith.divf %18, %19 : vector<1x8xf32>
    %c0_12 = arith.constant 0 : index
    %c0_13 = arith.constant 0 : index
    %21 = vector.load %arg7[%c0_12, %c0_13] : memref<16x32xf32, #tpu.memory_space<vmem>>, vector<16x32xf32>
    %c0_14 = arith.constant 0 : index
    %c0_15 = arith.constant 0 : index
    %22 = vector.load %arg2[%c0_14, %c0_15] : memref<8x32xf32, #tpu.memory_space<vmem>>, vector<8x32xf32>
    %cst_16 = arith.constant dense<0.000000e+00> : vector<16x8xf32>
    %23 = tpu.matmul %21, %22, %cst_16 {dimension_numbers = #tpu.dot_dimension_numbers<[1], [1], [0], [0], [0, 0, 1, 0], [], []>} : vector<16x32xf32>, vector<8x32xf32>, vector<16x8xf32> -> vector<16x8xf32>
    %c0_17 = arith.constant 0 : index
    %c0_18 = arith.constant 0 : index
    %24 = vector.load %arg8[%c0_17, %c0_18] : memref<16x1xf32, #tpu.memory_space<vmem>>, vector<16x1xf32>
    %25 = vector.broadcast %24 : vector<16x1xf32> to vector<16x8xf32>
    %26 = arith.addf %23, %25 : vector<16x8xf32>
    %cst_19 = arith.constant 0.000000e+00 : f32
    %27 = vector.broadcast %cst_19 : f32 to vector<16x8xf32>
    %28 = arith.maximumf %26, %27 : vector<16x8xf32>
    %c0_20 = arith.constant 0 : index
    %c0_21 = arith.constant 0 : index
    %29 = vector.load %arg9[%c0_20, %c0_21] : memref<16x1xf32, #tpu.memory_space<vmem>>, vector<16x1xf32>
    %30 = vector.broadcast %29 : vector<16x1xf32> to vector<16x8xf32>
    %31 = arith.mulf %28, %30 : vector<16x8xf32>
    %cst_22 = arith.constant dense<0.000000e+00> : vector<8xf32>
    %32 = vector.multi_reduction <add>, %31, %cst_22 [0] : vector<16x8xf32> to vector<8xf32>
    %33 = vector.shape_cast %32 : vector<8xf32> to vector<1x8xf32>
    %c0_23 = arith.constant 0 : index
    %c0_24 = arith.constant 0 : index
    %34 = vector.load %arg10[%c0_23, %c0_24] : memref<1x1xf32, #tpu.memory_space<vmem>>, vector<1x1xf32>
    %35 = vector.broadcast %34 : vector<1x1xf32> to vector<1x8xf32>
    %36 = arith.addf %33, %35 : vector<1x8xf32>
    %37 = arith.negf %36 : vector<1x8xf32>
    %38 = math.exp %37 : vector<1x8xf32>
    %cst_25 = arith.constant 1.000000e+00 : f32
    %39 = vector.broadcast %cst_25 : f32 to vector<1x8xf32>
    %40 = arith.addf %39, %38 : vector<1x8xf32>
    %41 = arith.divf %39, %40 : vector<1x8xf32>
    %cst_26 = arith.constant 2.000000e+00 : f32
    %42 = vector.broadcast %cst_26 : f32 to vector<1x8xf32>
    %43 = arith.addf %42, %20 : vector<1x8xf32>
    %44 = arith.addf %43, %41 : vector<1x8xf32>
    %cst_27 = arith.constant 1.000000e+00 : f32
    %45 = vector.broadcast %cst_27 : f32 to vector<1x8xf32>
    %46 = arith.divf %45, %44 : vector<1x8xf32>
    %cst_28 = arith.constant 1.000000e+00 : f32
    %47 = vector.broadcast %cst_28 : f32 to vector<1x8xf32>
    %48 = arith.addf %47, %41 : vector<1x8xf32>
    %49 = arith.mulf %48, %46 : vector<1x8xf32>
    %c0_29 = arith.constant 0 : index
    %c0_30 = arith.constant 0 : index
    %50 = vector.load %arg11[%c0_29, %c0_30] : memref<2x8xf32, #tpu.memory_space<vmem>>, vector<1x8xf32>
    tpu.vector_store %arg11[%c0_29, %c0_30], %49 {strides = array<i32>} : memref<2x8xf32, #tpu.memory_space<vmem>>, vector<1x8xf32>,
    %cst_31 = arith.constant 1.000000e+00 : f32
    %51 = vector.broadcast %cst_31 : f32 to vector<1x8xf32>
    %52 = arith.addf %51, %20 : vector<1x8xf32>
    %53 = arith.mulf %52, %46 : vector<1x8xf32>
    %c1 = arith.constant 1 : index
    %c0_32 = arith.constant 0 : index
    %54 = vector.load %arg11[%c1, %c0_32] : memref<2x8xf32, #tpu.memory_space<vmem>>, vector<1x8xf32>
    tpu.vector_store %arg11[%c1, %c0_32], %53 {strides = array<i32>} : memref<2x8xf32, #tpu.memory_space<vmem>>, vector<1x8xf32>,
    return
  }
  func.func @transform_0(%arg0: i32) -> (i32, i32) {
    %c0_i32 = arith.constant 0 : i32
    %c0_i32_0 = arith.constant 0 : i32
    return %arg0, %c0_i32 : i32, i32
  }
  func.func @transform_1(%arg0: i32) -> (i32, i32) {
    %c0_i32 = arith.constant 0 : i32
    %c0_i32_0 = arith.constant 0 : i32
    return %arg0, %c0_i32 : i32, i32
  }
  func.func @transform_2(%arg0: i32) -> (i32, i32) {
    %c0_i32 = arith.constant 0 : i32
    %c0_i32_0 = arith.constant 0 : i32
    %c0_i32_1 = arith.constant 0 : i32
    return %c0_i32, %c0_i32_0 : i32, i32
  }
  func.func @transform_3(%arg0: i32) -> (i32, i32) {
    %c0_i32 = arith.constant 0 : i32
    %c0_i32_0 = arith.constant 0 : i32
    %c0_i32_1 = arith.constant 0 : i32
    return %c0_i32, %c0_i32_0 : i32, i32
  }
  func.func @transform_4(%arg0: i32) -> (i32, i32) {
    %c0_i32 = arith.constant 0 : i32
    %c0_i32_0 = arith.constant 0 : i32
    %c0_i32_1 = arith.constant 0 : i32
    return %c0_i32, %c0_i32_0 : i32, i32
  }
  func.func @transform_5(%arg0: i32) -> (i32, i32) {
    %c0_i32 = arith.constant 0 : i32
    %c0_i32_0 = arith.constant 0 : i32
    %c0_i32_1 = arith.constant 0 : i32
    return %c0_i32, %c0_i32_0 : i32, i32
  }
  func.func @transform_6(%arg0: i32) -> (i32, i32) {
    %c0_i32 = arith.constant 0 : i32
    %c0_i32_0 = arith.constant 0 : i32
    %c0_i32_1 = arith.constant 0 : i32
    return %c0_i32, %c0_i32_0 : i32, i32
  }
  func.func @transform_7(%arg0: i32) -> (i32, i32) {
    %c0_i32 = arith.constant 0 : i32
    %c0_i32_0 = arith.constant 0 : i32
    %c0_i32_1 = arith.constant 0 : i32
    return %c0_i32, %c0_i32_0 : i32, i32
  }
  func.func @transform_8(%arg0: i32) -> (i32, i32) {
    %c0_i32 = arith.constant 0 : i32
    %c0_i32_0 = arith.constant 0 : i32
    %c0_i32_1 = arith.constant 0 : i32
    return %c0_i32, %c0_i32_0 : i32, i32
  }
  func.func @transform_9(%arg0: i32) -> (i32, i32) {
    %c0_i32 = arith.constant 0 : i32
    %c0_i32_0 = arith.constant 0 : i32
    %c0_i32_1 = arith.constant 0 : i32
    return %c0_i32, %c0_i32_0 : i32, i32
  }
  func.func @transform_10(%arg0: i32) -> (i32, i32) {
    %c0_i32 = arith.constant 0 : i32
    %c0_i32_0 = arith.constant 0 : i32
    return %c0_i32, %arg0 : i32, i32
  }
}

module attributes {stable_mosaic.version = 11 : i64} {
  func.func @_amw_kernel(%arg0: i32, %arg1: memref<8x32xf32, #tpu.memory_space<vmem>>, %arg2: memref<8x32xf32, #tpu.memory_space<vmem>>, %arg3: memref<16x32xf32, #tpu.memory_space<vmem>>, %arg4: memref<16x1xf32, #tpu.memory_space<vmem>>, %arg5: memref<16x1xf32, #tpu.memory_space<vmem>>, %arg6: memref<1x1xf32, #tpu.memory_space<vmem>>, %arg7: memref<16x32xf32, #tpu.memory_space<vmem>>, %arg8: memref<16x1xf32, #tpu.memory_space<vmem>>, %arg9: memref<16x1xf32, #tpu.memory_space<vmem>>, %arg10: memref<1x1xf32, #tpu.memory_space<vmem>>, %arg11: memref<2x8xf32, #tpu.memory_space<vmem>>) attributes {dimension_semantics = [#tpu.dimension_semantics<parallel>], iteration_bounds = array<i64: 1>, scalar_prefetch = 0 : i64, scratch_operands = 0 : i64, tpu.core_type = #tpu.core_type<tc>, window_params = [{transform_indices = @transform_0, window_bounds = array<i64: 8, 32>}, {transform_indices = @transform_1, window_bounds = array<i64: 8, 32>}, {pipeline_mode = #tpu.pipeline_mode<synchronous>, transform_indices = @transform_2, window_bounds = array<i64: 16, 32>}, {pipeline_mode = #tpu.pipeline_mode<synchronous>, transform_indices = @transform_3, window_bounds = array<i64: 16, 1>}, {pipeline_mode = #tpu.pipeline_mode<synchronous>, transform_indices = @transform_4, window_bounds = array<i64: 16, 1>}, {pipeline_mode = #tpu.pipeline_mode<synchronous>, transform_indices = @transform_5, window_bounds = array<i64: 1, 1>}, {pipeline_mode = #tpu.pipeline_mode<synchronous>, transform_indices = @transform_6, window_bounds = array<i64: 16, 32>}, {pipeline_mode = #tpu.pipeline_mode<synchronous>, transform_indices = @transform_7, window_bounds = array<i64: 16, 1>}, {pipeline_mode = #tpu.pipeline_mode<synchronous>, transform_indices = @transform_8, window_bounds = array<i64: 16, 1>}, {pipeline_mode = #tpu.pipeline_mode<synchronous>, transform_indices = @transform_9, window_bounds = array<i64: 1, 1>}, {transform_indices = @transform_10, window_bounds = array<i64: 2, 8>}]} {
    %c0 = arith.constant 0 : index
    %c0_0 = arith.constant 0 : index
    %0 = vector.load %arg3[%c0, %c0_0] : memref<16x32xf32, #tpu.memory_space<vmem>>, vector<16x32xf32>
    %c0_1 = arith.constant 0 : index
    %c0_2 = arith.constant 0 : index
    %1 = vector.load %arg1[%c0_1, %c0_2] : memref<8x32xf32, #tpu.memory_space<vmem>>, vector<8x32xf32>
    %cst = arith.constant dense<0.000000e+00> : vector<16x8xf32>
    %2 = tpu.matmul %0, %1, %cst {dimension_numbers = #tpu.dot_dimension_numbers<[1], [1], [0], [0], [0, 0, 1, 0], [], []>} : vector<16x32xf32>, vector<8x32xf32>, vector<16x8xf32> -> vector<16x8xf32>
    %c0_3 = arith.constant 0 : index
    %c0_4 = arith.constant 0 : index
    %3 = vector.load %arg4[%c0_3, %c0_4] : memref<16x1xf32, #tpu.memory_space<vmem>>, vector<16x1xf32>
    %4 = vector.broadcast %3 : vector<16x1xf32> to vector<16x8xf32>
    %5 = arith.addf %2, %4 : vector<16x8xf32>
    %cst_5 = arith.constant 0.000000e+00 : f32
    %6 = vector.broadcast %cst_5 : f32 to vector<16x8xf32>
    %7 = arith.maximumf %5, %6 : vector<16x8xf32>
    %c0_6 = arith.constant 0 : index
    %c0_7 = arith.constant 0 : index
    %8 = vector.load %arg5[%c0_6, %c0_7] : memref<16x1xf32, #tpu.memory_space<vmem>>, vector<16x1xf32>
    %9 = vector.broadcast %8 : vector<16x1xf32> to vector<16x8xf32>
    %10 = arith.mulf %7, %9 : vector<16x8xf32>
    %cst_8 = arith.constant dense<0.000000e+00> : vector<8xf32>
    %11 = vector.multi_reduction <add>, %10, %cst_8 [0] : vector<16x8xf32> to vector<8xf32>
    %12 = vector.shape_cast %11 : vector<8xf32> to vector<1x8xf32>
    %c0_9 = arith.constant 0 : index
    %c0_10 = arith.constant 0 : index
    %13 = vector.load %arg6[%c0_9, %c0_10] : memref<1x1xf32, #tpu.memory_space<vmem>>, vector<1x1xf32>
    %14 = vector.broadcast %13 : vector<1x1xf32> to vector<1x8xf32>
    %15 = arith.addf %12, %14 : vector<1x8xf32>
    %16 = arith.negf %15 : vector<1x8xf32>
    %17 = math.exp %16 : vector<1x8xf32>
    %cst_11 = arith.constant 1.000000e+00 : f32
    %18 = vector.broadcast %cst_11 : f32 to vector<1x8xf32>
    %19 = arith.addf %18, %17 : vector<1x8xf32>
    %20 = arith.divf %18, %19 : vector<1x8xf32>
    %c0_12 = arith.constant 0 : index
    %c0_13 = arith.constant 0 : index
    %21 = vector.load %arg7[%c0_12, %c0_13] : memref<16x32xf32, #tpu.memory_space<vmem>>, vector<16x32xf32>
    %c0_14 = arith.constant 0 : index
    %c0_15 = arith.constant 0 : index
    %22 = vector.load %arg2[%c0_14, %c0_15] : memref<8x32xf32, #tpu.memory_space<vmem>>, vector<8x32xf32>
    %cst_16 = arith.constant dense<0.000000e+00> : vector<16x8xf32>
    %23 = tpu.matmul %21, %22, %cst_16 {dimension_numbers = #tpu.dot_dimension_numbers<[1], [1], [0], [0], [0, 0, 1, 0], [], []>} : vector<16x32xf32>, vector<8x32xf32>, vector<16x8xf32> -> vector<16x8xf32>
    %c0_17 = arith.constant 0 : index
    %c0_18 = arith.constant 0 : index
    %24 = vector.load %arg8[%c0_17, %c0_18] : memref<16x1xf32, #tpu.memory_space<vmem>>, vector<16x1xf32>
    %25 = vector.broadcast %24 : vector<16x1xf32> to vector<16x8xf32>
    %26 = arith.addf %23, %25 : vector<16x8xf32>
    %cst_19 = arith.constant 0.000000e+00 : f32
    %27 = vector.broadcast %cst_19 : f32 to vector<16x8xf32>
    %28 = arith.maximumf %26, %27 : vector<16x8xf32>
    %c0_20 = arith.constant 0 : index
    %c0_21 = arith.constant 0 : index
    %29 = vector.load %arg9[%c0_20, %c0_21] : memref<16x1xf32, #tpu.memory_space<vmem>>, vector<16x1xf32>
    %30 = vector.broadcast %29 : vector<16x1xf32> to vector<16x8xf32>
    %31 = arith.mulf %28, %30 : vector<16x8xf32>
    %cst_22 = arith.constant dense<0.000000e+00> : vector<8xf32>
    %32 = vector.multi_reduction <add>, %31, %cst_22 [0] : vector<16x8xf32> to vector<8xf32>
    %33 = vector.shape_cast %32 : vector<8xf32> to vector<1x8xf32>
    %c0_23 = arith.constant 0 : index
    %c0_24 = arith.constant 0 : index
    %34 = vector.load %arg10[%c0_23, %c0_24] : memref<1x1xf32, #tpu.memory_space<vmem>>, vector<1x1xf32>
    %35 = vector.broadcast %34 : vector<1x1xf32> to vector<1x8xf32>
    %36 = arith.addf %33, %35 : vector<1x8xf32>
    %37 = arith.negf %36 : vector<1x8xf32>
    %38 = math.exp %37 : vector<1x8xf32>
    %cst_25 = arith.constant 1.000000e+00 : f32
    %39 = vector.broadcast %cst_25 : f32 to vector<1x8xf32>
    %40 = arith.addf %39, %38 : vector<1x8xf32>
    %41 = arith.divf %39, %40 : vector<1x8xf32>
    %cst_26 = arith.constant 2.000000e+00 : f32
    %42 = vector.broadcast %cst_26 : f32 to vector<1x8xf32>
    %43 = arith.addf %42, %20 : vector<1x8xf32>
    %44 = arith.addf %43, %41 : vector<1x8xf32>
    %cst_27 = arith.constant 1.000000e+00 : f32
    %45 = vector.broadcast %cst_27 : f32 to vector<1x8xf32>
    %46 = arith.divf %45, %44 : vector<1x8xf32>
    %cst_28 = arith.constant 1.000000e+00 : f32
    %47 = vector.broadcast %cst_28 : f32 to vector<1x8xf32>
    %48 = arith.addf %47, %41 : vector<1x8xf32>
    %49 = arith.mulf %48, %46 : vector<1x8xf32>
    %c0_29 = arith.constant 0 : index
    %c0_30 = arith.constant 0 : index
    %50 = vector.load %arg11[%c0_29, %c0_30] : memref<2x8xf32, #tpu.memory_space<vmem>>, vector<1x8xf32>
    tpu.vector_store %arg11[%c0_29, %c0_30], %49 {strides = array<i32>} : memref<2x8xf32, #tpu.memory_space<vmem>>, vector<1x8xf32>,
    %cst_31 = arith.constant 1.000000e+00 : f32
    %51 = vector.broadcast %cst_31 : f32 to vector<1x8xf32>
    %52 = arith.addf %51, %20 : vector<1x8xf32>
    %53 = arith.mulf %52, %46 : vector<1x8xf32>
    %c1 = arith.constant 1 : index
    %c0_32 = arith.constant 0 : index
    %54 = vector.load %arg11[%c1, %c0_32] : memref<2x8xf32, #tpu.memory_space<vmem>>, vector<1x8xf32>
    tpu.vector_store %arg11[%c1, %c0_32], %53 {strides = array<i32>} : memref<2x8xf32, #tpu.memory_space<vmem>>, vector<1x8xf32>,
    return
  }
  func.func @transform_0(%arg0: i32) -> (i32, i32) {
    %c0_i32 = arith.constant 0 : i32
    %c0_i32_0 = arith.constant 0 : i32
    return %arg0, %c0_i32 : i32, i32
  }
  func.func @transform_1(%arg0: i32) -> (i32, i32) {
    %c0_i32 = arith.constant 0 : i32
    %c0_i32_0 = arith.constant 0 : i32
    return %arg0, %c0_i32 : i32, i32
  }
  func.func @transform_2(%arg0: i32) -> (i32, i32) {
    %c0_i32 = arith.constant 0 : i32
    %c0_i32_0 = arith.constant 0 : i32
    %c0_i32_1 = arith.constant 0 : i32
    return %c0_i32, %c0_i32_0 : i32, i32
  }
  func.func @transform_3(%arg0: i32) -> (i32, i32) {
    %c0_i32 = arith.constant 0 : i32
    %c0_i32_0 = arith.constant 0 : i32
    %c0_i32_1 = arith.constant 0 : i32
    return %c0_i32, %c0_i32_0 : i32, i32
  }
  func.func @transform_4(%arg0: i32) -> (i32, i32) {
    %c0_i32 = arith.constant 0 : i32
    %c0_i32_0 = arith.constant 0 : i32
    %c0_i32_1 = arith.constant 0 : i32
    return %c0_i32, %c0_i32_0 : i32, i32
  }
  func.func @transform_5(%arg0: i32) -> (i32, i32) {
    %c0_i32 = arith.constant 0 : i32
    %c0_i32_0 = arith.constant 0 : i32
    %c0_i32_1 = arith.constant 0 : i32
    return %c0_i32, %c0_i32_0 : i32, i32
  }
  func.func @transform_6(%arg0: i32) -> (i32, i32) {
    %c0_i32 = arith.constant 0 : i32
    %c0_i32_0 = arith.constant 0 : i32
    %c0_i32_1 = arith.constant 0 : i32
    return %c0_i32, %c0_i32_0 : i32, i32
  }
  func.func @transform_7(%arg0: i32) -> (i32, i32) {
    %c0_i32 = arith.constant 0 : i32
    %c0_i32_0 = arith.constant 0 : i32
    %c0_i32_1 = arith.constant 0 : i32
    return %c0_i32, %c0_i32_0 : i32, i32
  }
  func.func @transform_8(%arg0: i32) -> (i32, i32) {
    %c0_i32 = arith.constant 0 : i32
    %c0_i32_0 = arith.constant 0 : i32
    %c0_i32_1 = arith.constant 0 : i32
    return %c0_i32, %c0_i32_0 : i32, i32
  }
  func.func @transform_9(%arg0: i32) -> (i32, i32) {
    %c0_i32 = arith.constant 0 : i32
    %c0_i32_0 = arith.constant 0 : i32
    %c0_i32_1 = arith.constant 0 : i32
    return %c0_i32, %c0_i32_0 : i32, i32
  }
  func.func @transform_10(%arg0: i32) -> (i32, i32) {
    %c0_i32 = arith.constant 0 : i32
    %c0_i32_0 = arith.constant 0 : i32
    return %c0_i32, %arg0 : i32, i32
  }
}

</mosaic_0001>

<llo_original>
// kernel: tpu_custom_call.1
$region0: #{tpu_custom_call.1}
  #allocation0 [shape = 'u32[]', space=smem, size = 0x4, offset = 0x4, fixed_abs, tag = 'smem constant byte address 0x4 - core index']
  #allocation1 [shape = 'u32[72,128]{1,0:T(1,128)}', space=vmem, size = 0x9000, scoped, tag = 'internal scratch']
  #allocation2 [shape = 'f32[1,1]{1,0:T(1,128)S(1)}', space=vmem, size = 0x200, scoped, tag = 'scoped memory for tpu_custom_call.1']
  #allocation3 [shape = 'f32[1,1]{1,0:T(1,128)S(1)}', space=vmem, size = 0x200, scoped, tag = 'scoped memory for tpu_custom_call.1']
  %s0 = inlined_call_operand.vmem [shape: f32[8,32], index: 0, kind: input, shape index: {}]
  %s1 = inlined_call_operand.vmem [shape: f32[8,32], index: 1, kind: input, shape index: {}]
  %s2 = inlined_call_operand.vmem [shape: f32[16,32], index: 2, kind: input, shape index: {}]
  %s3 = inlined_call_operand.vmem [shape: f32[16,1], index: 3, kind: input, shape index: {}]
  %s4 = inlined_call_operand.vmem [shape: f32[16,1], index: 4, kind: input, shape index: {}]
  %s5 = inlined_call_operand.<no memory space> [shape: f32[1,1], index: 5, kind: input, shape index: {}]
  %s6 = inlined_call_operand.vmem [shape: f32[16,32], index: 6, kind: input, shape index: {}]
  %s7 = inlined_call_operand.vmem [shape: f32[16,1], index: 7, kind: input, shape index: {}]
  %s8 = inlined_call_operand.vmem [shape: f32[16,1], index: 8, kind: input, shape index: {}]
  %s9 = inlined_call_operand.<no memory space> [shape: f32[1,1], index: 9, kind: input, shape index: {}]
  %s10 = inlined_call_operand.hbm [shape: f32[2,8], index: 10, kind: output, shape index: {}]
  %s11 = sld [smem:[#allocation0]]
  $region50: #{tpu_custom_call.1} parent=0
    _
  %s13 = ssub.s32 1, %s11
  %s14 = scalar_select 0, %s13, %s11
  %v15 = vstv %s5
  %16 = vst [vmem:[#allocation2] sm:$0x1] %v15
  %v17 = vstv %s9
  %18 = vst [vmem:[#allocation3] sm:$0x1] %v17
  $region1: #{tpu_custom_call.1} parent=0
    #allocation4 [shape = 'u8[1024]{0}', space=vmem, size = 0x400, scoped, tag = 'output window, operand 0, single buffered']
    #allocation5 [shape = 's32[1]{0}', space=sflag, size = 0x4, scoped, tag = 'scoped memory for tpu_custom_call.1']
    %19 = vsyncpa [#allocation5], 0
    // Predicated region
    $region2: #{tpu_custom_call.1} parent=1 // pred_check
      _
    $region3: #{tpu_custom_call.1} parent=1 // pred_check_branch
      %21 = sbr.rel (0) target = $region5
    $region4: #{tpu_custom_call.1} parent=1 // pred_region
      _
    $region5: #{tpu_custom_call.1} parent=1 // pred_fallthru
      _
    // Predicated region
    $region6: #{tpu_custom_call.1} parent=1 // pred_check
      _
    $region7: #{tpu_custom_call.1} parent=1 // pred_check_branch
      %23 = sbr.rel (0) target = $region9
    $region8: #{tpu_custom_call.1} parent=1 // pred_region
      _
    $region9: #{tpu_custom_call.1} parent=1 // pred_fallthru
      _
    // Predicated region
    $region10: #{tpu_custom_call.1} parent=1 // pred_check
      _
    $region11: #{tpu_custom_call.1} parent=1 // pred_check_branch
      %25 = sbr.rel (0) target = $region13
    $region12: #{tpu_custom_call.1} parent=1 // pred_region
      _
    $region13: #{tpu_custom_call.1} parent=1 // pred_fallthru
      _
    // Predicated region
    $region14: #{tpu_custom_call.1} parent=1 // pred_check
      _
    $region15: #{tpu_custom_call.1} parent=1 // pred_check_branch
      %27 = sbr.rel (0) target = $region17
    $region16: #{tpu_custom_call.1} parent=1 // pred_region
      _
    $region17: #{tpu_custom_call.1} parent=1 // pred_fallthru
      _
    // Predicated region
    $region18: #{tpu_custom_call.1} parent=1 // pred_check
      _
    $region19: #{tpu_custom_call.1} parent=1 // pred_check_branch
      %29 = sbr.rel (0) target = $region21
    $region20: #{tpu_custom_call.1} parent=1 // pred_region
      _
    $region21: #{tpu_custom_call.1} parent=1 // pred_fallthru
      _
    // Predicated region
    $region22: #{tpu_custom_call.1} parent=1 // pred_check
      _
    $region23: #{tpu_custom_call.1} parent=1 // pred_check_branch
      %31 = sbr.rel (0) target = $region25
    $region24: #{tpu_custom_call.1} parent=1 // pred_region
      _
    $region25: #{tpu_custom_call.1} parent=1 // pred_fallthru
      _
    // Predicated region
    $region26: #{tpu_custom_call.1} parent=1 // pred_check
      _
    $region27: #{tpu_custom_call.1} parent=1 // pred_check_branch
      %33 = sbr.rel (0) target = $region29
    $region28: #{tpu_custom_call.1} parent=1 // pred_region
      _
    $region29: #{tpu_custom_call.1} parent=1 // pred_fallthru
      _
    // Predicated region
    $region30: #{tpu_custom_call.1} parent=1 // pred_check
      _
    $region31: #{tpu_custom_call.1} parent=1 // pred_check_branch
      %35 = sbr.rel (0) target = $region33
    $region32: #{tpu_custom_call.1} parent=1 // pred_region
      _
    $region33: #{tpu_custom_call.1} parent=1 // pred_fallthru
      _
    // Predicated region
    $region34: #{tpu_custom_call.1} parent=1 // pred_check
      _
    $region35: #{tpu_custom_call.1} parent=1 // pred_check_branch
      %37 = sbr.rel (0) target = $region37
    $region36: #{tpu_custom_call.1} parent=1 // pred_region
      _
    $region37: #{tpu_custom_call.1} parent=1 // pred_fallthru
      _
    // Predicated region
    $region38: #{tpu_custom_call.1} parent=1 // pred_check
      _
    $region39: #{tpu_custom_call.1} parent=1 // pred_check_branch
      %39 = sbr.rel (0) target = $region41
    $region40: #{tpu_custom_call.1} parent=1 // pred_region
      _
    $region41: #{tpu_custom_call.1} parent=1 // pred_fallthru
      _
    %v40 = vld [vmem:[%s2] sm:$0xff]
    %v41 = vld [vmem:[%s2 + $0x8] sm:$0xff]
    %v42 = vld [vmem:[%s0] sm:$0xff]
    %v43 = vld [vmem:[%s3] sm:$0xff]
    %v44 = vld [vmem:[%s3 + $0x8] sm:$0xff]
    %46 = vset.pattern.permute.xlu0 0
    %47 = vperm.xlu0 %46, %v43
    %v48 = vpop.permute.xlu0 %47
    %51 = vset.pattern.permute.xlu0 0
    %52 = vperm.xlu0 %51, %v44
    %v53 = vpop.permute.xlu0 %52
    %vm55 = vcmask 261120
    %v57 = vsel %vm55, %v40, 0
    %v60 = vsel %vm55, %v41, 0
    %v63 = vsel %vm55, %v42, 0
    %65 = vmatpush.xpose.msra.mxu0 0.0
    %66 = vmatpush.xpose.msra.mxu0 0.0
    %67 = vmatpush.xpose.msra.mxu0 0.0
    %68 = vmatpush.xpose.msra.mxu0 0.0
    %69 = vmatpush.xpose.msra.mxu0 0.0
    %70 = vmatpush.xpose.msra.mxu0 0.0
    %71 = vmatpush.xpose.msra.mxu0 0.0
    %72 = vmatpush.xpose.msra.mxu0 0.0
    %73 = vmatpush.xpose.msra.mxu0 0.0
    %74 = vmatpush.xpose.msra.mxu0 0.0
    %75 = vmatpush.xpose.msra.mxu0 0.0
    %76 = vmatpush.xpose.msra.mxu0 0.0
    %77 = vmatpush.xpose.msra.mxu0 0.0
    %78 = vmatpush.xpose.msra.mxu0 0.0
    %79 = vmatpush.xpose.msra.mxu0 0.0
    %80 = vmatpush.xpose.msra.mxu0 %v63
    %81 = vmatmul.f32.gmra.mxu0 %v57
    %v82 = vpop.f32.mrf.mxu0
    %v83 = vadd.f32 %v48, %v82
    %84 = vmatmul.f32.gmra.mxu0 %v60
    %v85 = vpop.f32.mrf.mxu0
    %v86 = vadd.f32 %v53, %v85
    %87 = vdwg.mxu0
    %v88 = vmax.f32 %v83, 0.0
    %v89 = vmax.f32 %v86, 0.0
    %v90 = vld [vmem:[%s4] sm:$0xff]
    %v91 = vld [vmem:[%s4 + $0x8] sm:$0xff]
    %93 = vset.pattern.permute.xlu0 0
    %94 = vperm.xlu0 %93, %v90
    %v95 = vpop.permute.xlu0 %94
    %98 = vset.pattern.permute.xlu0 0
    %99 = vperm.xlu0 %98, %v91
    %v100 = vpop.permute.xlu0 %99
    %v102 = vmul.f32 %v88, %v95
    %v103 = vmul.f32 %v89, %v100
    %vm104 = vcmask 64512
    %v105 = vsel %vm104, %v102, 0.0
    %v106 = vsel %vm104, %v103, 0.0
    %v107 = vadd.f32 %v105, %v106
    %v108 = vrot.slane %v107, 4
    %v109 = vadd.f32 %v107, %v108
    %v110 = vrot.slane %v109, 2
    %v111 = vadd.f32 %v109, %v110
    %v112 = vrot.slane %v111, 1
    %v113 = vadd.f32 %v111, %v112
    %v114 = vld [vmem:[#allocation2] sm:$0x1]
    %116 = vset.pattern.permute.xlu0 0
    %117 = vperm.xlu0 %116, %v114
    %v118 = vpop.permute.xlu0 %117
    %v120 = vperm.slane %v118, 0
    %v121 = vadd.f32 %v113, %v120
    %v122 = vxor.u32 %v121, 2147483648
    %v123 = vmul.f32 %v122, 1.442695
    %v124 = vpow.pop %v123
    %v125 = vadd.f32 %v124, 1.0
    %v126 = vrcp.pop %v125
    %v127 = vmul.f32 %v125, %v126
    %v128 = vsub.f32 1.0, %v127
    %v129 = vmul.f32 %v126, %v128
    %v130 = vadd.f32 %v126, %v129
    %vm131 = vweird.f32 %v125
    %vm132 = vweird.f32 %v126
    %vm133 = vmor %vm131, %vm132
    %v134 = vsel %vm133, %v126, %v130
    %v135 = vand.u32 2147483647, %v125
    %vm136 = vcmp.eq.f32.partialorder %v135, 8.507059e+37
    %v137 = vand.u32 %v125, 2147483648
    %v138 = vor.u32 1.1754944e-38, %v137
    %v139 = vsel %vm136, %v138, %v134
    %v140 = vmul.f32 1.0, %v139
    %v141 = vld [vmem:[%s6] sm:$0xff]
    %v142 = vld [vmem:[%s6 + $0x8] sm:$0xff]
    %v143 = vld [vmem:[%s1] sm:$0xff]
    %v144 = vld [vmem:[%s7] sm:$0xff]
    %v145 = vld [vmem:[%s7 + $0x8] sm:$0xff]
    %147 = vset.pattern.permute.xlu0 0
    %148 = vperm.xlu0 %147, %v144
    %v149 = vpop.permute.xlu0 %148
    %152 = vset.pattern.permute.xlu0 0
    %153 = vperm.xlu0 %152, %v145
    %v154 = vpop.permute.xlu0 %153
    %v157 = vsel %vm55, %v141, 0
    %v160 = vsel %vm55, %v142, 0
    %v163 = vsel %vm55, %v143, 0
    %165 = vmatpush.xpose.msra.mxu0 0.0
    %166 = vmatpush.xpose.msra.mxu0 0.0
    %167 = vmatpush.xpose.msra.mxu0 0.0
    %168 = vmatpush.xpose.msra.mxu0 0.0
    %169 = vmatpush.xpose.msra.mxu0 0.0
    %170 = vmatpush.xpose.msra.mxu0 0.0
    %171 = vmatpush.xpose.msra.mxu0 0.0
    %172 = vmatpush.xpose.msra.mxu0 0.0
    %173 = vmatpush.xpose.msra.mxu0 0.0
    %174 = vmatpush.xpose.msra.mxu0 0.0
    %175 = vmatpush.xpose.msra.mxu0 0.0
    %176 = vmatpush.xpose.msra.mxu0 0.0
    %177 = vmatpush.xpose.msra.mxu0 0.0
    %178 = vmatpush.xpose.msra.mxu0 0.0
    %179 = vmatpush.xpose.msra.mxu0 0.0
    %180 = vmatpush.xpose.msra.mxu0 %v163
    %181 = vmatmul.f32.gmra.mxu0 %v157
    %v182 = vpop.f32.mrf.mxu0
    %v183 = vadd.f32 %v149, %v182
    %184 = vmatmul.f32.gmra.mxu0 %v160
    %v185 = vpop.f32.mrf.mxu0
    %v186 = vadd.f32 %v154, %v185
    %187 = vdwg.mxu0
    %v188 = vmax.f32 %v183, 0.0
    %v189 = vmax.f32 %v186, 0.0
    %v190 = vld [vmem:[%s8] sm:$0xff]
    %v191 = vld [vmem:[%s8 + $0x8] sm:$0xff]
    %193 = vset.pattern.permute.xlu0 0
    %194 = vperm.xlu0 %193, %v190
    %v195 = vpop.permute.xlu0 %194
    %198 = vset.pattern.permute.xlu0 0
    %199 = vperm.xlu0 %198, %v191
    %v200 = vpop.permute.xlu0 %199
    %v202 = vmul.f32 %v188, %v195
    %v203 = vmul.f32 %v189, %v200
    %v204 = vsel %vm104, %v202, 0.0
    %v205 = vsel %vm104, %v203, 0.0
    %v206 = vadd.f32 %v204, %v205
    %v207 = vrot.slane %v206, 4
    %v208 = vadd.f32 %v206, %v207
    %v209 = vrot.slane %v208, 2
    %v210 = vadd.f32 %v208, %v209
    %v211 = vrot.slane %v210, 1
    %v212 = vadd.f32 %v210, %v211
    %v213 = vld [vmem:[#allocation3] sm:$0x1]
    %215 = vset.pattern.permute.xlu0 0
    %216 = vperm.xlu0 %215, %v213
    %v217 = vpop.permute.xlu0 %216
    %v219 = vperm.slane %v217, 0
    %v220 = vadd.f32 %v212, %v219
    %v221 = vxor.u32 %v220, 2147483648
    %v222 = vmul.f32 %v221, 1.442695
    %v223 = vpow.pop %v222
    %v224 = vadd.f32 %v223, 1.0
    %v225 = vrcp.pop %v224
    %v226 = vmul.f32 %v224, %v225
    %v227 = vsub.f32 1.0, %v226
    %v228 = vmul.f32 %v225, %v227
    %v229 = vadd.f32 %v225, %v228
    %vm230 = vweird.f32 %v224
    %vm231 = vweird.f32 %v225
    %vm232 = vmor %vm230, %vm231
    %v233 = vsel %vm232, %v225, %v229
    %v234 = vand.u32 2147483647, %v224
    %vm235 = vcmp.eq.f32.partialorder %v234, 8.507059e+37
    %v236 = vand.u32 %v224, 2147483648
    %v237 = vor.u32 1.1754944e-38, %v236
    %v238 = vsel %vm235, %v237, %v233
    %v239 = vmul.f32 1.0, %v238
    %v240 = vadd.f32 %v140, 2.0
    %v241 = vadd.f32 %v240, %v239
    %v242 = vrcp.pop %v241
    %v243 = vmul.f32 %v241, %v242
    %v244 = vsub.f32 1.0, %v243
    %v245 = vmul.f32 %v242, %v244
    %v246 = vadd.f32 %v242, %v245
    %vm247 = vweird.f32 %v241
    %vm248 = vweird.f32 %v242
    %vm249 = vmor %vm247, %vm248
    %v250 = vsel %vm249, %v242, %v246
    %v251 = vand.u32 2147483647, %v241
    %vm252 = vcmp.eq.f32.partialorder %v251, 8.507059e+37
    %v253 = vand.u32 %v241, 2147483648
    %v254 = vor.u32 1.1754944e-38, %v253
    %v255 = vsel %vm252, %v254, %v250
    %v256 = vmul.f32 1.0, %v255
    %v257 = vadd.f32 %v239, 1.0
    %v258 = vmul.f32 %v257, %v256
    %vm259 = vcmask 57344
    %260 = vst.msk [vmem:[#allocation4] sm:$0x1] %vm259, %v258
    %v261 = vadd.f32 %v140, 1.0
    %v262 = vmul.f32 %v261, %v256
    %263 = vst.msk [vmem:[#allocation4 + $0x1] sm:$0x1] %vm259, %v262
    // Predicated region
    $region42: #{tpu_custom_call.1} parent=1 // pred_check
      _
    $region43: #{tpu_custom_call.1} parent=1 // pred_check_branch
      %265 = sbr.rel (0) target = $region45
    $region44: #{tpu_custom_call.1} parent=1 // pred_region
      %267 = vsyncadd [#allocation5], 0
      %s269 = sshll.u32 [#allocation4], 4
      %s270 = int_to_ptr.vmem [resolvable:$true] %s269
      %s271 = sshll.u32 %s10, 4
      %s272 = int_to_ptr.hbm [resolvable:$true] %s271
      %274 = dma.vmem_to_hbm [thread:$0]  %s270, 32, %s272, [#allocation5]
    $region45: #{tpu_custom_call.1} parent=1 // pred_fallthru
      _
    // Predicated region
    $region46: #{tpu_custom_call.1} parent=1 // pred_check
      _
    $region47: #{tpu_custom_call.1} parent=1 // pred_check_branch
      %276 = sbr.rel (0) target = $region49
    $region48: #{tpu_custom_call.1} parent=1 // pred_region
      %278 = dma.done [#allocation5], 32
    $region49: #{tpu_custom_call.1} parent=1 // pred_fallthru
      _
    %279 = vsyncpa [#allocation5], 1

// kernel: tpu_custom_call.1
$region0: #{tpu_custom_call.1}
  #allocation0 [shape = 'u32[]', space=smem, size = 0x4, offset = 0x4, fixed_abs, tag = 'smem constant byte address 0x4 - core index']
  #allocation1 [shape = 'u32[72,128]{1,0:T(1,128)}', space=vmem, size = 0x9000, scoped, tag = 'internal scratch']
  #allocation2 [shape = 'f32[1,1]{1,0:T(1,128)S(1)}', space=vmem, size = 0x200, scoped, tag = 'scoped memory for tpu_custom_call.1']
  #allocation3 [shape = 'f32[1,1]{1,0:T(1,128)S(1)}', space=vmem, size = 0x200, scoped, tag = 'scoped memory for tpu_custom_call.1']
  %s0 = inlined_call_operand.vmem [shape: f32[8,32], index: 0, kind: input, shape index: {}]
  %s1 = inlined_call_operand.vmem [shape: f32[8,32], index: 1, kind: input, shape index: {}]
  %s2 = inlined_call_operand.vmem [shape: f32[16,32], index: 2, kind: input, shape index: {}]
  %s3 = inlined_call_operand.vmem [shape: f32[16,1], index: 3, kind: input, shape index: {}]
  %s4 = inlined_call_operand.vmem [shape: f32[16,1], index: 4, kind: input, shape index: {}]
  %s5 = inlined_call_operand.<no memory space> [shape: f32[1,1], index: 5, kind: input, shape index: {}]
  %s6 = inlined_call_operand.vmem [shape: f32[16,32], index: 6, kind: input, shape index: {}]
  %s7 = inlined_call_operand.vmem [shape: f32[16,1], index: 7, kind: input, shape index: {}]
  %s8 = inlined_call_operand.vmem [shape: f32[16,1], index: 8, kind: input, shape index: {}]
  %s9 = inlined_call_operand.<no memory space> [shape: f32[1,1], index: 9, kind: input, shape index: {}]
  %s10 = inlined_call_operand.hbm [shape: f32[2,8], index: 10, kind: output, shape index: {}]
  %s11 = sld [smem:[#allocation0]]
  $region50: #{tpu_custom_call.1} parent=0
    _
  %s13 = ssub.s32 1, %s11
  %s14 = scalar_select 0, %s13, %s11
  %v15 = vstv %s5
  %16 = vst [vmem:[#allocation2] sm:$0x1] %v15
  %v17 = vstv %s9
  %18 = vst [vmem:[#allocation3] sm:$0x1] %v17
  $region1: #{tpu_custom_call.1} parent=0
    #allocation4 [shape = 'u8[1024]{0}', space=vmem, size = 0x400, scoped, tag = 'output window, operand 0, single buffered']
    #allocation5 [shape = 's32[1]{0}', space=sflag, size = 0x4, scoped, tag = 'scoped memory for tpu_custom_call.1']
    %19 = vsyncpa [#allocation5], 0
    // Predicated region
    $region2: #{tpu_custom_call.1} parent=1 // pred_check
      _
    $region3: #{tpu_custom_call.1} parent=1 // pred_check_branch
      %21 = sbr.rel (0) target = $region5
    $region4: #{tpu_custom_call.1} parent=1 // pred_region
      _
    $region5: #{tpu_custom_call.1} parent=1 // pred_fallthru
      _
    // Predicated region
    $region6: #{tpu_custom_call.1} parent=1 // pred_check
      _
    $region7: #{tpu_custom_call.1} parent=1 // pred_check_branch
      %23 = sbr.rel (0) target = $region9
    $region8: #{tpu_custom_call.1} parent=1 // pred_region
      _
    $region9: #{tpu_custom_call.1} parent=1 // pred_fallthru
      _
    // Predicated region
    $region10: #{tpu_custom_call.1} parent=1 // pred_check
      _
    $region11: #{tpu_custom_call.1} parent=1 // pred_check_branch
      %25 = sbr.rel (0) target = $region13
    $region12: #{tpu_custom_call.1} parent=1 // pred_region
      _
    $region13: #{tpu_custom_call.1} parent=1 // pred_fallthru
      _
    // Predicated region
    $region14: #{tpu_custom_call.1} parent=1 // pred_check
      _
    $region15: #{tpu_custom_call.1} parent=1 // pred_check_branch
      %27 = sbr.rel (0) target = $region17
    $region16: #{tpu_custom_call.1} parent=1 // pred_region
      _
    $region17: #{tpu_custom_call.1} parent=1 // pred_fallthru
      _
    // Predicated region
    $region18: #{tpu_custom_call.1} parent=1 // pred_check
      _
    $region19: #{tpu_custom_call.1} parent=1 // pred_check_branch
      %29 = sbr.rel (0) target = $region21
    $region20: #{tpu_custom_call.1} parent=1 // pred_region
      _
    $region21: #{tpu_custom_call.1} parent=1 // pred_fallthru
      _
    // Predicated region
    $region22: #{tpu_custom_call.1} parent=1 // pred_check
      _
    $region23: #{tpu_custom_call.1} parent=1 // pred_check_branch
      %31 = sbr.rel (0) target = $region25
    $region24: #{tpu_custom_call.1} parent=1 // pred_region
      _
    $region25: #{tpu_custom_call.1} parent=1 // pred_fallthru
      _
    // Predicated region
    $region26: #{tpu_custom_call.1} parent=1 // pred_check
      _
    $region27: #{tpu_custom_call.1} parent=1 // pred_check_branch
      %33 = sbr.rel (0) target = $region29
    $region28: #{tpu_custom_call.1} parent=1 // pred_region
      _
    $region29: #{tpu_custom_call.1} parent=1 // pred_fallthru
      _
    // Predicated region
    $region30: #{tpu_custom_call.1} parent=1 // pred_check
      _
    $region31: #{tpu_custom_call.1} parent=1 // pred_check_branch
      %35 = sbr.rel (0) target = $region33
    $region32: #{tpu_custom_call.1} parent=1 // pred_region
      _
    $region33: #{tpu_custom_call.1} parent=1 // pred_fallthru
      _
    // Predicated region
    $region34: #{tpu_custom_call.1} parent=1 // pred_check
      _
    $region35: #{tpu_custom_call.1} parent=1 // pred_check_branch
      %37 = sbr.rel (0) target = $region37
    $region36: #{tpu_custom_call.1} parent=1 // pred_region
      _
    $region37: #{tpu_custom_call.1} parent=1 // pred_fallthru
      _
    // Predicated region
    $region38: #{tpu_custom_call.1} parent=1 // pred_check
      _
    $region39: #{tpu_custom_call.1} parent=1 // pred_check_branch
      %39 = sbr.rel (0) target = $region41
    $region40: #{tpu_custom_call.1} parent=1 // pred_region
      _
    $region41: #{tpu_custom_call.1} parent=1 // pred_fallthru
      _
    %v40 = vld [vmem:[%s2] sm:$0xff]
    %v41 = vld [vmem:[%s2 + $0x8] sm:$0xff]
    %v42 = vld [vmem:[%s0] sm:$0xff]
    %v43 = vld [vmem:[%s3] sm:$0xff]
    %v44 = vld [vmem:[%s3 + $0x8] sm:$0xff]
    %46 = vset.pattern.permute.xlu0 0
    %47 = vperm.xlu0 %46, %v43
    %v48 = vpop.permute.xlu0 %47
    %51 = vset.pattern.permute.xlu0 0
    %52 = vperm.xlu0 %51, %v44
    %v53 = vpop.permute.xlu0 %52
    %vm55 = vcmask 261120
    %v57 = vsel %vm55, %v40, 0
    %v60 = vsel %vm55, %v41, 0
    %v63 = vsel %vm55, %v42, 0
    %65 = vmatpush.xpose.msra.mxu0 0.0
    %66 = vmatpush.xpose.msra.mxu0 0.0
    %67 = vmatpush.xpose.msra.mxu0 0.0
    %68 = vmatpush.xpose.msra.mxu0 0.0
    %69 = vmatpush.xpose.msra.mxu0 0.0
    %70 = vmatpush.xpose.msra.mxu0 0.0
    %71 = vmatpush.xpose.msra.mxu0 0.0
    %72 = vmatpush.xpose.msra.mxu0 0.0
    %73 = vmatpush.xpose.msra.mxu0 0.0
    %74 = vmatpush.xpose.msra.mxu0 0.0
    %75 = vmatpush.xpose.msra.mxu0 0.0
    %76 = vmatpush.xpose.msra.mxu0 0.0
    %77 = vmatpush.xpose.msra.mxu0 0.0
    %78 = vmatpush.xpose.msra.mxu0 0.0
    %79 = vmatpush.xpose.msra.mxu0 0.0
    %80 = vmatpush.xpose.msra.mxu0 %v63
    %81 = vmatmul.f32.gmra.mxu0 %v57
    %v82 = vpop.f32.mrf.mxu0
    %v83 = vadd.f32 %v48, %v82
    %84 = vmatmul.f32.gmra.mxu0 %v60
    %v85 = vpop.f32.mrf.mxu0
    %v86 = vadd.f32 %v53, %v85
    %87 = vdwg.mxu0
    %v88 = vmax.f32 %v83, 0.0
    %v89 = vmax.f32 %v86, 0.0
    %v90 = vld [vmem:[%s4] sm:$0xff]
    %v91 = vld [vmem:[%s4 + $0x8] sm:$0xff]
    %93 = vset.pattern.permute.xlu0 0
    %94 = vperm.xlu0 %93, %v90
    %v95 = vpop.permute.xlu0 %94
    %98 = vset.pattern.permute.xlu0 0
    %99 = vperm.xlu0 %98, %v91
    %v100 = vpop.permute.xlu0 %99
    %v102 = vmul.f32 %v88, %v95
    %v103 = vmul.f32 %v89, %v100
    %vm104 = vcmask 64512
    %v105 = vsel %vm104, %v102, 0.0
    %v106 = vsel %vm104, %v103, 0.0
    %v107 = vadd.f32 %v105, %v106
    %v108 = vrot.slane %v107, 4
    %v109 = vadd.f32 %v107, %v108
    %v110 = vrot.slane %v109, 2
    %v111 = vadd.f32 %v109, %v110
    %v112 = vrot.slane %v111, 1
    %v113 = vadd.f32 %v111, %v112
    %v114 = vld [vmem:[#allocation2] sm:$0x1]
    %116 = vset.pattern.permute.xlu0 0
    %117 = vperm.xlu0 %116, %v114
    %v118 = vpop.permute.xlu0 %117
    %v120 = vperm.slane %v118, 0
    %v121 = vadd.f32 %v113, %v120
    %v122 = vxor.u32 %v121, 2147483648
    %v123 = vmul.f32 %v122, 1.442695
    %v124 = vpow.pop %v123
    %v125 = vadd.f32 %v124, 1.0
    %v126 = vrcp.pop %v125
    %v127 = vmul.f32 %v125, %v126
    %v128 = vsub.f32 1.0, %v127
    %v129 = vmul.f32 %v126, %v128
    %v130 = vadd.f32 %v126, %v129
    %vm131 = vweird.f32 %v125
    %vm132 = vweird.f32 %v126
    %vm133 = vmor %vm131, %vm132
    %v134 = vsel %vm133, %v126, %v130
    %v135 = vand.u32 2147483647, %v125
    %vm136 = vcmp.eq.f32.partialorder %v135, 8.507059e+37
    %v137 = vand.u32 %v125, 2147483648
    %v138 = vor.u32 1.1754944e-38, %v137
    %v139 = vsel %vm136, %v138, %v134
    %v140 = vmul.f32 1.0, %v139
    %v141 = vld [vmem:[%s6] sm:$0xff]
    %v142 = vld [vmem:[%s6 + $0x8] sm:$0xff]
    %v143 = vld [vmem:[%s1] sm:$0xff]
    %v144 = vld [vmem:[%s7] sm:$0xff]
    %v145 = vld [vmem:[%s7 + $0x8] sm:$0xff]
    %147 = vset.pattern.permute.xlu0 0
    %148 = vperm.xlu0 %147, %v144
    %v149 = vpop.permute.xlu0 %148
    %152 = vset.pattern.permute.xlu0 0
    %153 = vperm.xlu0 %152, %v145
    %v154 = vpop.permute.xlu0 %153
    %v157 = vsel %vm55, %v141, 0
    %v160 = vsel %vm55, %v142, 0
    %v163 = vsel %vm55, %v143, 0
    %165 = vmatpush.xpose.msra.mxu0 0.0
    %166 = vmatpush.xpose.msra.mxu0 0.0
    %167 = vmatpush.xpose.msra.mxu0 0.0
    %168 = vmatpush.xpose.msra.mxu0 0.0
    %169 = vmatpush.xpose.msra.mxu0 0.0
    %170 = vmatpush.xpose.msra.mxu0 0.0
    %171 = vmatpush.xpose.msra.mxu0 0.0
    %172 = vmatpush.xpose.msra.mxu0 0.0
    %173 = vmatpush.xpose.msra.mxu0 0.0
    %174 = vmatpush.xpose.msra.mxu0 0.0
    %175 = vmatpush.xpose.msra.mxu0 0.0
    %176 = vmatpush.xpose.msra.mxu0 0.0
    %177 = vmatpush.xpose.msra.mxu0 0.0
    %178 = vmatpush.xpose.msra.mxu0 0.0
    %179 = vmatpush.xpose.msra.mxu0 0.0
    %180 = vmatpush.xpose.msra.mxu0 %v163
    %181 = vmatmul.f32.gmra.mxu0 %v157
    %v182 = vpop.f32.mrf.mxu0
    %v183 = vadd.f32 %v149, %v182
    %184 = vmatmul.f32.gmra.mxu0 %v160
    %v185 = vpop.f32.mrf.mxu0
    %v186 = vadd.f32 %v154, %v185
    %187 = vdwg.mxu0
    %v188 = vmax.f32 %v183, 0.0
    %v189 = vmax.f32 %v186, 0.0
    %v190 = vld [vmem:[%s8] sm:$0xff]
    %v191 = vld [vmem:[%s8 + $0x8] sm:$0xff]
    %193 = vset.pattern.permute.xlu0 0
    %194 = vperm.xlu0 %193, %v190
    %v195 = vpop.permute.xlu0 %194
    %198 = vset.pattern.permute.xlu0 0
    %199 = vperm.xlu0 %198, %v191
    %v200 = vpop.permute.xlu0 %199
    %v202 = vmul.f32 %v188, %v195
    %v203 = vmul.f32 %v189, %v200
    %v204 = vsel %vm104, %v202, 0.0
    %v205 = vsel %vm104, %v203, 0.0
    %v206 = vadd.f32 %v204, %v205
    %v207 = vrot.slane %v206, 4
    %v208 = vadd.f32 %v206, %v207
    %v209 = vrot.slane %v208, 2
    %v210 = vadd.f32 %v208, %v209
    %v211 = vrot.slane %v210, 1
    %v212 = vadd.f32 %v210, %v211
    %v213 = vld [vmem:[#allocation3] sm:$0x1]
    %215 = vset.pattern.permute.xlu0 0
    %216 = vperm.xlu0 %215, %v213
    %v217 = vpop.permute.xlu0 %216
    %v219 = vperm.slane %v217, 0
    %v220 = vadd.f32 %v212, %v219
    %v221 = vxor.u32 %v220, 2147483648
    %v222 = vmul.f32 %v221, 1.442695
    %v223 = vpow.pop %v222
    %v224 = vadd.f32 %v223, 1.0
    %v225 = vrcp.pop %v224
    %v226 = vmul.f32 %v224, %v225
    %v227 = vsub.f32 1.0, %v226
    %v228 = vmul.f32 %v225, %v227
    %v229 = vadd.f32 %v225, %v228
    %vm230 = vweird.f32 %v224
    %vm231 = vweird.f32 %v225
    %vm232 = vmor %vm230, %vm231
    %v233 = vsel %vm232, %v225, %v229
    %v234 = vand.u32 2147483647, %v224
    %vm235 = vcmp.eq.f32.partialorder %v234, 8.507059e+37
    %v236 = vand.u32 %v224, 2147483648
    %v237 = vor.u32 1.1754944e-38, %v236
    %v238 = vsel %vm235, %v237, %v233
    %v239 = vmul.f32 1.0, %v238
    %v240 = vadd.f32 %v140, 2.0
    %v241 = vadd.f32 %v240, %v239
    %v242 = vrcp.pop %v241
    %v243 = vmul.f32 %v241, %v242
    %v244 = vsub.f32 1.0, %v243
    %v245 = vmul.f32 %v242, %v244
    %v246 = vadd.f32 %v242, %v245
    %vm247 = vweird.f32 %v241
    %vm248 = vweird.f32 %v242
    %vm249 = vmor %vm247, %vm248
    %v250 = vsel %vm249, %v242, %v246
    %v251 = vand.u32 2147483647, %v241
    %vm252 = vcmp.eq.f32.partialorder %v251, 8.507059e+37
    %v253 = vand.u32 %v241, 2147483648
    %v254 = vor.u32 1.1754944e-38, %v253
    %v255 = vsel %vm252, %v254, %v250
    %v256 = vmul.f32 1.0, %v255
    %v257 = vadd.f32 %v239, 1.0
    %v258 = vmul.f32 %v257, %v256
    %vm259 = vcmask 57344
    %260 = vst.msk [vmem:[#allocation4] sm:$0x1] %vm259, %v258
    %v261 = vadd.f32 %v140, 1.0
    %v262 = vmul.f32 %v261, %v256
    %263 = vst.msk [vmem:[#allocation4 + $0x1] sm:$0x1] %vm259, %v262
    // Predicated region
    $region42: #{tpu_custom_call.1} parent=1 // pred_check
      _
    $region43: #{tpu_custom_call.1} parent=1 // pred_check_branch
      %265 = sbr.rel (0) target = $region45
    $region44: #{tpu_custom_call.1} parent=1 // pred_region
      %267 = vsyncadd [#allocation5], 0
      %s269 = sshll.u32 [#allocation4], 4
      %s270 = int_to_ptr.vmem [resolvable:$true] %s269
      %s271 = sshll.u32 %s10, 4
      %s272 = int_to_ptr.hbm [resolvable:$true] %s271
      %274 = dma.vmem_to_hbm [thread:$0]  %s270, 32, %s272, [#allocation5]
    $region45: #{tpu_custom_call.1} parent=1 // pred_fallthru
      _
    // Predicated region
    $region46: #{tpu_custom_call.1} parent=1 // pred_check
      _
    $region47: #{tpu_custom_call.1} parent=1 // pred_check_branch
      %276 = sbr.rel (0) target = $region49
    $region48: #{tpu_custom_call.1} parent=1 // pred_region
      %278 = dma.done [#allocation5], 32
    $region49: #{tpu_custom_call.1} parent=1 // pred_fallthru
      _
    %279 = vsyncpa [#allocation5], 1

</llo_original>
